<compile_context>
chip_gen: v7x
topology: tpu7x:2x2x1
jax: 0.10.0
libtpu: 0.0.40
codegen_flags: <defaults>
</compile_context>

<pallas_src>
import functools
import math

import jax
import jax.numpy as jnp
from jax import lax
from jax.experimental import pallas as pl
from jax.experimental.pallas import tpu as pltpu


def _round_up(x, m):
    return ((x + m - 1) // m) * m


# ---------------------------------------------------------------------------
# Kernel 1: fused Q/K/V projection. Scale folded into Q, bf16 outputs (MXU feed).
# ---------------------------------------------------------------------------
def _qkv_proj_kernel(x_ref, wq_ref, wk_ref, wv_ref, q_ref, k_ref, v_ref, *, scale):
    x = x_ref[0]                                                   # (rows, d_in_pad) f32
    q = jnp.dot(x, wq_ref[...], preferred_element_type=jnp.float32) * scale
    k = jnp.dot(x, wk_ref[...], preferred_element_type=jnp.float32)
    v = jnp.dot(x, wv_ref[...], preferred_element_type=jnp.float32)
    q_ref[0] = q.astype(q_ref.dtype)
    k_ref[0] = k.astype(k_ref.dtype)
    v_ref[0] = v.astype(v_ref.dtype)


# ---------------------------------------------------------------------------
# Kernel 2: causal flash attention over a compacted lower-triangle grid.
# grid = (B, n_steps); step s handles q tile qi_ref[s], kv tile ki_ref[s] (ki <= qi).
# ---------------------------------------------------------------------------
def _flash_causal_kernel(qi_ref, ki_ref, q_ref, k_ref, v_ref, o_ref,
                         m_scr, l_scr, acc_scr):
    s_idx = pl.program_id(1)
    qi = qi_ref[s_idx]
    ki = ki_ref[s_idx]

    @pl.when(ki == 0)
    def _init():
        m_scr[...] = jnp.full(m_scr.shape, -jnp.inf, dtype=jnp.float32)
        l_scr[...] = jnp.zeros(l_scr.shape, dtype=jnp.float32)
        acc_scr[...] = jnp.zeros(acc_scr.shape, dtype=jnp.float32)

    q = q_ref[0]          # (tile, d_pad) bf16, pre-scaled by 1/sqrt(d_out)
    k = k_ref[0]          # (tile, d_pad) bf16
    v = v_ref[0]          # (tile, d_pad) bf16

    # scores = q @ k^T without materializing a transpose (contract last dims).
    scores = lax.dot_general(q, k, (((1,), (1,)), ((), ())),
                             preferred_element_type=jnp.float32)   # (tile, tile) f32

    def _online_update(s):
        m_prev = m_scr[...]
        m_new = jnp.maximum(m_prev, jnp.max(s, axis=-1, keepdims=True))
        alpha = jnp.exp(m_prev - m_new)
        p = jnp.exp(s - m_new)
        l_scr[...] = alpha * l_scr[...] + jnp.sum(p, axis=-1, keepdims=True)
        acc_scr[...] = alpha * acc_scr[...] + lax.dot_general(
            p.astype(jnp.bfloat16), v, (((1,), (0,)), ((), ())),
            preferred_element_type=jnp.float32)
        m_scr[...] = m_new

    # Below-diagonal tiles are fully unmasked -> no iota/compare/where VPU work.
    @pl.when(ki < qi)
    def _below_diag():
        _online_update(scores)

    # Diagonal tile: local causal mask (tq == tkv so q_start == kv_start), then finalize
    # (the diagonal tile is the last compacted step for this q tile).
    @pl.when(ki == qi)
    def _diag_and_finalize():
        row = lax.broadcasted_iota(jnp.int32, scores.shape, 0)
        col = lax.broadcasted_iota(jnp.int32, scores.shape, 1)
        _online_update(jnp.where(col > row, -jnp.inf, scores))
        inv_l = pl.reciprocal(l_scr[...], approx=True)             # EUP, not VPU divide
        o_ref[0] = (acc_scr[...] * inv_l).astype(o_ref.dtype)


def causal_attention(x, w_query, w_key, w_value, *, tile=None):
    """x: (B, T, d_in) f32; weights: (d_out, d_in) torch.nn.Linear layout. Returns (B, T, d_out)."""
    B, T, d_in = x.shape
    d_out = w_query.shape[0]

    if tile is None:
        # 256-multiples fill the v6e/v7x MXU; 16-granule on the small-T path (bf16 packing).
        tile = min(256, _round_up(T, 16))
    t_pad = _round_up(T, tile)
    d_in_pad = _round_up(d_in, 128)
    d_pad = _round_up(d_out, 128)               # lane-dense output / contraction dims
    n_t = t_pad // tile

    # Zero padding keeps the real outputs unchanged; padded rows/cols are sliced off below
    # (padded K columns always fall in the last/diagonal kv tile where the causal mask kills them).
    x_p = jnp.pad(x, ((0, 0), (0, t_pad - T), (0, d_in_pad - d_in)))

    def _prep_w(w):  # (d_out, d_in) -> (d_in_pad, d_pad), transposed once outside the kernel
        return jnp.pad(w.T, ((0, d_in_pad - d_in), (0, d_pad - d_out)))

    wq_t, wk_t, wv_t = _prep_w(w_query), _prep_w(w_key), _prep_w(w_value)
    scale = 1.0 / math.sqrt(d_out)              # reference uses keys.shape[-1] == d_out

    # --- Q/K/V projection: weights resident, large row tiles to amortize step overhead ---
    proj_tile = tile
    for cand in (1024, 512, 256):
        if t_pad % cand == 0:
            proj_tile = cand
            break
    n_proj = t_pad // proj_tile

    qkv_shape = jax.ShapeDtypeStruct((B, t_pad, d_pad), jnp.bfloat16)
    q, k, v = pl.pallas_call(
        functools.partial(_qkv_proj_kernel, scale=scale),
        out_shape=(qkv_shape, qkv_shape, qkv_shape),
        grid=(B, n_proj),
        in_specs=[
            pl.BlockSpec((1, proj_tile, d_in_pad), lambda b, i: (b, i, 0)),
            pl.BlockSpec((d_in_pad, d_pad), lambda b, i: (0, 0)),   # weights stay resident
            pl.BlockSpec((d_in_pad, d_pad), lambda b, i: (0, 0)),
            pl.BlockSpec((d_in_pad, d_pad), lambda b, i: (0, 0)),
        ],
        out_specs=(
            pl.BlockSpec((1, proj_tile, d_pad), lambda b, i: (b, i, 0)),
            pl.BlockSpec((1, proj_tile, d_pad), lambda b, i: (b, i, 0)),
            pl.BlockSpec((1, proj_tile, d_pad), lambda b, i: (b, i, 0)),
        ),
        compiler_params=pltpu.CompilerParams(
            dimension_semantics=("parallel", "parallel")),
    )(x_p, wq_t, wk_t, wv_t)

    # --- compacted causal flash attention (scalar-prefetched (qi, ki) schedule) ---
    pairs = [(qi, ki) for qi in range(n_t) for ki in range(qi + 1)]
    qi_idx = jnp.asarray([p[0] for p in pairs], dtype=jnp.int32)
    ki_idx = jnp.asarray([p[1] for p in pairs], dtype=jnp.int32)
    n_steps = len(pairs)

    grid_spec = pltpu.PrefetchScalarGridSpec(
        num_scalar_prefetch=2,
        grid=(B, n_steps),
        in_specs=[
            # Q tile: resident across a qi group (index unchanged until qi advances).
            pl.BlockSpec((1, tile, d_pad), lambda b, s, qi, ki: (b, qi[s], 0)),
            # K / V tiles: only lower-triangle blocks are ever fetched.
            pl.BlockSpec((1, tile, d_pad), lambda b, s, qi, ki: (b, ki[s], 0)),
            pl.BlockSpec((1, tile, d_pad), lambda b, s, qi, ki: (b, ki[s], 0)),
        ],
        out_specs=pl.BlockSpec((1, tile, d_pad), lambda b, s, qi, ki: (b, qi[s], 0)),
        scratch_shapes=[
            pltpu.VMEM((tile, 1), jnp.float32),       # running max m
            pltpu.VMEM((tile, 1), jnp.float32),       # running denom l
            pltpu.VMEM((tile, d_pad), jnp.float32),   # running numerator acc
        ],
    )

    out_pad = pl.pallas_call(
        _flash_causal_kernel,
        out_shape=jax.ShapeDtypeStruct((B, t_pad, d_pad), x.dtype),
        grid_spec=grid_spec,
        compiler_params=pltpu.CompilerParams(
            dimension_semantics=("parallel", "arbitrary")),
    )(qi_idx, ki_idx, q, k, v)

    return out_pad[:, :T, :d_out]


def _reference(x, wq, wk, wv):
    q = jnp.einsum("btd,od->bto", x, wq)
    k = jnp.einsum("btd,od->bto", x, wk)
    v = jnp.einsum("btd,od->bto", x, wv)
    s = jnp.einsum("bqo,bko->bqk", q, k)
    T = x.shape[1]
    mask = jnp.triu(jnp.ones((T, T), dtype=bool), k=1)
    s = jnp.where(mask[None], -jnp.inf, s)
    w = jax.nn.softmax(s / math.sqrt(k.shape[-1]), axis=-1)
    return jnp.einsum("bqk,bko->bqo", w, v)


if __name__ == "__main__":
    # bf16 MXU operands (f32 accumulation) -> tolerances loosened vs a pure-f32 reference.
    ATOL = RTOL = 5e-2

    # --- Case 1: shapes implied by the script (B=2, T=6, d_in=3, d_out=2) ---
    inputs = jnp.array(
        [[0.43, 0.15, 0.89],
         [0.55, 0.87, 0.66],
         [0.57, 0.85, 0.64],
         [0.22, 0.58, 0.33],
         [0.77, 0.25, 0.10],
         [0.05, 0.80, 0.55]], dtype=jnp.float32)
    x1 = jnp.stack([inputs, inputs], axis=0)                       # (2, 6, 3)

    key = jax.random.PRNGKey(0)
    kq, kk, kv = jax.random.split(key, 3)
    bound = 1.0 / math.sqrt(3)
    wq1 = jax.random.uniform(kq, (2, 3), jnp.float32, -bound, bound)
    wk1 = jax.random.uniform(kk, (2, 3), jnp.float32, -bound, bound)
    wv1 = jax.random.uniform(kv, (2, 3), jnp.float32, -bound, bound)

    out1 = jax.block_until_ready(causal_attention(x1, wq1, wk1, wv1))
    ref1 = _reference(x1, wq1, wk1, wv1)
    assert out1.shape == (2, 6, 2)
    assert jnp.allclose(out1, ref1, atol=ATOL, rtol=RTOL), "case1 mismatch vs reference"

    # --- Case 2: multi-tile case exercising the compacted grid, online softmax and
    #             the diagonal-mask / below-diagonal fast paths (n_t = 3, 6 steps/batch) ---
    B2, T2, din2, dout2 = 2, 600, 16, 8
    kx2, kq2, kk2, kv2 = jax.random.split(jax.random.PRNGKey(0), 4)
    x2 = jax.random.normal(kx2, (B2, T2, din2), jnp.float32)
    bound2 = 1.0 / math.sqrt(din2)
    wq2 = jax.random.uniform(kq2, (dout2, din2), jnp.float32, -bound2, bound2)
    wk2 = jax.random.uniform(kk2, (dout2, din2), jnp.float32, -bound2, bound2)
    wv2 = jax.random.uniform(kv2, (dout2, din2), jnp.float32, -bound2, bound2)

    out2 = jax.block_until_ready(causal_attention(x2, wq2, wk2, wv2))
    ref2 = _reference(x2, wq2, wk2, wv2)
    assert out2.shape == (B2, T2, dout2)
    assert jnp.allclose(out2, ref2, atol=ATOL, rtol=RTOL), "case2 mismatch vs reference"

    print("KERNEL_OK")
</pallas_src>

<mosaic_0001>
module attributes {stable_mosaic.version = 11 : i64} {
  func.func @_qkv_proj_kernel(%arg0: i32, %arg1: i32, %arg2: memref<1x16x128xf32, #tpu.memory_space<vmem>>, %arg3: memref<128x128xf32, #tpu.memory_space<vmem>>, %arg4: memref<128x128xf32, #tpu.memory_space<vmem>>, %arg5: memref<128x128xf32, #tpu.memory_space<vmem>>, %arg6: memref<1x16x128xbf16, #tpu.memory_space<vmem>>, %arg7: memref<1x16x128xbf16, #tpu.memory_space<vmem>>, %arg8: memref<1x16x128xbf16, #tpu.memory_space<vmem>>) attributes {dimension_semantics = [#tpu.dimension_semantics<parallel>, #tpu.dimension_semantics<parallel>], iteration_bounds = array<i64: 2, 1>, scalar_prefetch = 0 : i64, scratch_operands = 0 : i64, tpu.core_type = #tpu.core_type<tc>, window_params = [{transform_indices = @transform_0, window_bounds = array<i64: 1, 16, 128>}, {pipeline_mode = #tpu.pipeline_mode<synchronous>, transform_indices = @transform_1, window_bounds = array<i64: 128, 128>}, {pipeline_mode = #tpu.pipeline_mode<synchronous>, transform_indices = @transform_2, window_bounds = array<i64: 128, 128>}, {pipeline_mode = #tpu.pipeline_mode<synchronous>, transform_indices = @transform_3, window_bounds = array<i64: 128, 128>}, {transform_indices = @transform_4, window_bounds = array<i64: 1, 16, 128>}, {transform_indices = @transform_5, window_bounds = array<i64: 1, 16, 128>}, {transform_indices = @transform_6, window_bounds = array<i64: 1, 16, 128>}]} {
    %c0 = arith.constant 0 : index
    %c0_0 = arith.constant 0 : index
    %c0_1 = arith.constant 0 : index
    %0 = vector.load %arg2[%c0, %c0_0, %c0_1] : memref<1x16x128xf32, #tpu.memory_space<vmem>>, vector<1x16x128xf32>
    %1 = vector.shape_cast %0 : vector<1x16x128xf32> to vector<16x128xf32>
    %c0_2 = arith.constant 0 : index
    %c0_3 = arith.constant 0 : index
    %2 = vector.load %arg3[%c0_2, %c0_3] : memref<128x128xf32, #tpu.memory_space<vmem>>, vector<128x128xf32>
    %cst = arith.constant dense<0.000000e+00> : vector<16x128xf32>
    %3 = tpu.matmul %1, %2, %cst {dimension_numbers = #tpu.dot_dimension_numbers<[1], [0], [0], [1], [0, 0, 1, 1], [], []>} : vector<16x128xf32>, vector<128x128xf32>, vector<16x128xf32> -> vector<16x128xf32>
    %cst_4 = arith.constant 0.707106769 : f32
    %4 = vector.broadcast %cst_4 : f32 to vector<16x128xf32>
    %5 = arith.mulf %3, %4 : vector<16x128xf32>
    %c0_5 = arith.constant 0 : index
    %c0_6 = arith.constant 0 : index
    %6 = vector.load %arg4[%c0_5, %c0_6] : memref<128x128xf32, #tpu.memory_space<vmem>>, vector<128x128xf32>
    %cst_7 = arith.constant dense<0.000000e+00> : vector<16x128xf32>
    %7 = tpu.matmul %1, %6, %cst_7 {dimension_numbers = #tpu.dot_dimension_numbers<[1], [0], [0], [1], [0, 0, 1, 1], [], []>} : vector<16x128xf32>, vector<128x128xf32>, vector<16x128xf32> -> vector<16x128xf32>
    %c0_8 = arith.constant 0 : index
    %c0_9 = arith.constant 0 : index
    %8 = vector.load %arg5[%c0_8, %c0_9] : memref<128x128xf32, #tpu.memory_space<vmem>>, vector<128x128xf32>
    %cst_10 = arith.constant dense<0.000000e+00> : vector<16x128xf32>
    %9 = tpu.matmul %1, %8, %cst_10 {dimension_numbers = #tpu.dot_dimension_numbers<[1], [0], [0], [1], [0, 0, 1, 1], [], []>} : vector<16x128xf32>, vector<128x128xf32>, vector<16x128xf32> -> vector<16x128xf32>
    %10 = arith.truncf %5 : vector<16x128xf32> to vector<16x128xbf16>
    %c0_11 = arith.constant 0 : index
    %c0_12 = arith.constant 0 : index
    %c0_13 = arith.constant 0 : index
    %11 = vector.load %arg6[%c0_11, %c0_12, %c0_13] : memref<1x16x128xbf16, #tpu.memory_space<vmem>>, vector<1x16x128xbf16>
    %12 = vector.shape_cast %11 : vector<1x16x128xbf16> to vector<16x128xbf16>
    %13 = vector.shape_cast %10 : vector<16x128xbf16> to vector<1x16x128xbf16>
    tpu.vector_store %arg6[%c0_11, %c0_12, %c0_13], %13 {strides = array<i32>} : memref<1x16x128xbf16, #tpu.memory_space<vmem>>, vector<1x16x128xbf16>,
    %14 = arith.truncf %7 : vector<16x128xf32> to vector<16x128xbf16>
    %c0_14 = arith.constant 0 : index
    %c0_15 = arith.constant 0 : index
    %c0_16 = arith.constant 0 : index
    %15 = vector.load %arg7[%c0_14, %c0_15, %c0_16] : memref<1x16x128xbf16, #tpu.memory_space<vmem>>, vector<1x16x128xbf16>
    %16 = vector.shape_cast %15 : vector<1x16x128xbf16> to vector<16x128xbf16>
    %17 = vector.shape_cast %14 : vector<16x128xbf16> to vector<1x16x128xbf16>
    tpu.vector_store %arg7[%c0_14, %c0_15, %c0_16], %17 {strides = array<i32>} : memref<1x16x128xbf16, #tpu.memory_space<vmem>>, vector<1x16x128xbf16>,
    %18 = arith.truncf %9 : vector<16x128xf32> to vector<16x128xbf16>
    %c0_17 = arith.constant 0 : index
    %c0_18 = arith.constant 0 : index
    %c0_19 = arith.constant 0 : index
    %19 = vector.load %arg8[%c0_17, %c0_18, %c0_19] : memref<1x16x128xbf16, #tpu.memory_space<vmem>>, vector<1x16x128xbf16>
    %20 = vector.shape_cast %19 : vector<1x16x128xbf16> to vector<16x128xbf16>
    %21 = vector.shape_cast %18 : vector<16x128xbf16> to vector<1x16x128xbf16>
    tpu.vector_store %arg8[%c0_17, %c0_18, %c0_19], %21 {strides = array<i32>} : memref<1x16x128xbf16, #tpu.memory_space<vmem>>, vector<1x16x128xbf16>,
    return
  }
  func.func @transform_0(%arg0: i32, %arg1: i32) -> (i32, i32, i32) {
    %c0_i32 = arith.constant 0 : i32
    %c0_i32_0 = arith.constant 0 : i32
    return %arg0, %arg1, %c0_i32 : i32, i32, i32
  }
  func.func @transform_1(%arg0: i32, %arg1: i32) -> (i32, i32) {
    %c0_i32 = arith.constant 0 : i32
    %c0_i32_0 = arith.constant 0 : i32
    %c0_i32_1 = arith.constant 0 : i32
    return %c0_i32, %c0_i32_0 : i32, i32
  }
  func.func @transform_2(%arg0: i32, %arg1: i32) -> (i32, i32) {
    %c0_i32 = arith.constant 0 : i32
    %c0_i32_0 = arith.constant 0 : i32
    %c0_i32_1 = arith.constant 0 : i32
    return %c0_i32, %c0_i32_0 : i32, i32
  }
  func.func @transform_3(%arg0: i32, %arg1: i32) -> (i32, i32) {
    %c0_i32 = arith.constant 0 : i32
    %c0_i32_0 = arith.constant 0 : i32
    %c0_i32_1 = arith.constant 0 : i32
    return %c0_i32, %c0_i32_0 : i32, i32
  }
  func.func @transform_4(%arg0: i32, %arg1: i32) -> (i32, i32, i32) {
    %c0_i32 = arith.constant 0 : i32
    %c0_i32_0 = arith.constant 0 : i32
    return %arg0, %arg1, %c0_i32 : i32, i32, i32
  }
  func.func @transform_5(%arg0: i32, %arg1: i32) -> (i32, i32, i32) {
    %c0_i32 = arith.constant 0 : i32
    %c0_i32_0 = arith.constant 0 : i32
    return %arg0, %arg1, %c0_i32 : i32, i32, i32
  }
  func.func @transform_6(%arg0: i32, %arg1: i32) -> (i32, i32, i32) {
    %c0_i32 = arith.constant 0 : i32
    %c0_i32_0 = arith.constant 0 : i32
    return %arg0, %arg1, %c0_i32 : i32, i32, i32
  }
}

</mosaic_0001>

<llo_original>
// kernel: tpu_custom_call.1
$region0: #{tpu_custom_call.1}
  #allocation0 [shape = 'u32[]', space=smem, size = 0x4, offset = 0x4, fixed_abs, tag = 'smem constant byte address 0x4 - core index']
  #allocation1 [shape = 'u32[144,128]{1,0:T(1,128)}', space=vmem, size = 0x12000, scoped, tag = 'internal scratch']
  %s0 = inlined_call_operand.hbm [shape: f32[2,16,128], index: 0, kind: input, shape index: {}]
  %s1 = inlined_call_operand.hbm [shape: f32[128,128], index: 1, kind: input, shape index: {}]
  %s2 = inlined_call_operand.hbm [shape: f32[128,128], index: 2, kind: input, shape index: {}]
  %s3 = inlined_call_operand.hbm [shape: f32[128,128], index: 3, kind: input, shape index: {}]
  %s4 = inlined_call_operand.hbm [shape: bf16[2,16,128], index: 4, kind: output, shape index: {0}]
  %s5 = inlined_call_operand.hbm [shape: bf16[2,16,128], index: 5, kind: output, shape index: {1}]
  %s6 = inlined_call_operand.hbm [shape: bf16[2,16,128], index: 6, kind: output, shape index: {2}]
  %7 = xla_tuple %s4, %s5, %s6
  %s8 = sld [smem:[#allocation0]]
  $region81: #{tpu_custom_call.1} parent=0
    _
  %s10 = ssub.s32 1, %s8
  %s11 = scalar_select 0, %s10, %s8
  $region1: #{tpu_custom_call.1} parent=0
    #allocation2 [shape = 'u8[16384]{0}', space=vmem, size = 0x4000, scoped, tag = 'input window, operand 0']
    #allocation3 [shape = 's32[2]{0}', space=sflag, size = 0x8, scoped, tag = 'scoped memory for tpu_custom_call.1']
    #allocation4 [shape = 's32[2]{0}', space=sflag, size = 0x8, scoped, tag = 'scoped memory for tpu_custom_call.1']
    #allocation5 [shape = 'u8[65536]{0}', space=vmem, size = 0x10000, scoped, tag = 'input window, operand 1, single buffered']
    #allocation6 [shape = 's32[1]{0}', space=sflag, size = 0x4, scoped, tag = 'scoped memory for tpu_custom_call.1']
    #allocation7 [shape = 'u8[65536]{0}', space=vmem, size = 0x10000, scoped, tag = 'input window, operand 2, single buffered']
    #allocation8 [shape = 'u8[65536]{0}', space=vmem, size = 0x10000, scoped, tag = 'input window, operand 3, single buffered']
    #allocation9 [shape = 's32[1]{0}', space=sflag, size = 0x4, scoped, tag = 'scoped memory for tpu_custom_call.1']
    #allocation10 [shape = 'u8[8192]{0}', space=vmem, size = 0x2000, scoped, tag = 'output window, operand 0']
    #allocation11 [shape = 'u8[8192]{0}', space=vmem, size = 0x2000, scoped, tag = 'output window, operand 1']
    #allocation12 [shape = 's32[2]{0}', space=sflag, size = 0x8, scoped, tag = 'scoped memory for tpu_custom_call.1']
    #allocation13 [shape = 'u8[8192]{0}', space=vmem, size = 0x2000, scoped, tag = 'output window, operand 2']
    %12 = vsyncpa [#allocation3], 0
    %s13 = scalar_lea.sflag [#allocation3], 1
    %14 = vsyncpa %s13, 0
    %15 = vsyncpa [#allocation6], 0
    %16 = vsyncpa [#allocation9], 0
    %17 = vsyncpa [#allocation4], 0
    %s18 = scalar_lea.sflag [#allocation4], 1
    %19 = vsyncpa %s18, 0
    %20 = vsyncpa [#allocation12], 0
    %s21 = scalar_lea.sflag [#allocation12], 1
    %22 = vsyncpa %s21, 0
    loop: start=0, step=1, limit=4
    $region2: #{tpu_custom_call.1} parent=1 // loop_pre_header
      _
    $region3: #{tpu_custom_call.1} parent=1 // loop_header
      %s24 = sphi 0, %s28
      %p25 = scmp.ge.s32.totalorder %s24, 4
      %s31 = sphi 0, %s43
      %s32 = sphi 0, %s39
      %s33 = sphi 0, %s31
      %s34 = sphi 0, %s32
      %s35 = sphi 0, %s33
      %s36 = sphi 0, %s34
      %s48 = sphi 0, %s50
      %s51 = sphi 0, %s48
      %s52 = sphi 0, %s51
      %s68 = sphi 0, %s52
      %s72 = sphi 0, %s72
      %s74 = sphi 0, %s72
      %s75 = sphi 0, %s74
      %s89 = sphi 0, %s75
      %s93 = sphi 0, %s93
      %s95 = sphi 0, %s93
      %s96 = sphi 0, %s95
      %s110 = sphi 0, %s96
      %s114 = sphi 0, %s114
      %s116 = sphi 0, %s114
      %s117 = sphi 0, %s116
      %s131 = sphi 0, %s117
      %s139 = sphi 0, %s141
      %s142 = sphi 0, %s139
      %s143 = sphi 0, %s142
      %s159 = sphi 0, %s143
      %s167 = sphi 0, %s169
      %s170 = sphi 0, %s167
      %s171 = sphi 0, %s170
      %s187 = sphi 0, %s171
      %s195 = sphi 0, %s197
      %s198 = sphi 0, %s195
      %s199 = sphi 0, %s198
      %s215 = sphi 0, %s199
    $region4: #{tpu_custom_call.1} parent=1 // loop_header_branch
      %27 = sbr.rel (%p25) target = $region8
    $region5: #{tpu_custom_call.1} parent=1 // loop_body
      %s29 = ssub.s32 %s24, 1
      %s30 = ssub.s32 %s24, 2
      %s37 = sadd.s32 1, %s32
      %p38 = scmp.ge.s32.totalorder %s37, 1
      %s39 = scalar_select %p38, 0, %s37
      %s40 = sadd.s32 1, %s31
      %s41 = scalar_select %p38, %s40, %s31
      %p42 = scmp.ge.s32.totalorder %s41, 2
      %s43 = scalar_select %p42, 0, %s41
      %s44 = ssub.s32 %s31, %s43
      %s45 = ssub.s32 %s32, %s39
      %s46 = sor.u32 %s44, %s45
      %p47 = scmp.eq.s32.totalorder %s46, 0
      %s49 = sadd.s32 %s48, 1
      %s50 = scalar_select %p47, %s48, %s49
      %p53 = pneg %p47
      %p54 = scmp.eq.s32.totalorder %s24, 1
      %p55 = por %p53, %p54
      %p56 = scmp.ne.s32.totalorder %s48, %s51
      %p57 = scmp.eq.s32.totalorder %s24, 0
      %p58 = por %p56, %p57
      %p59 = scmp.ne.s32.totalorder %s48, %s51
      %p60 = scmp.eq.s32.totalorder %s29, 1
      %p61 = por %p59, %p60
      %p62 = scmp.ne.s32.totalorder %s51, %s52
      %p63 = scmp.eq.s32.totalorder %s29, 0
      %p64 = por %p62, %p63
      %p65 = scmp.ne.s32.totalorder %s51, %s52
      %p66 = scmp.eq.s32.totalorder %s30, 1
      %p67 = por %p65, %p66
      %p69 = scmp.ne.s32.totalorder %s52, %s68
      %p70 = scmp.eq.s32.totalorder %s30, 0
      %p71 = por %p69, %p70
      %s73 = sadd.s32 %s72, 1
      %p76 = scmp.eq.s32.totalorder %s24, 1
      %p77 = scmp.ne.s32.totalorder %s72, %s74
      %p78 = scmp.eq.s32.totalorder %s24, 0
      %p79 = por %p77, %p78
      %p80 = scmp.ne.s32.totalorder %s72, %s74
      %p81 = scmp.eq.s32.totalorder %s29, 1
      %p82 = por %p80, %p81
      %p83 = scmp.ne.s32.totalorder %s74, %s75
      %p84 = scmp.eq.s32.totalorder %s29, 0
      %p85 = por %p83, %p84
      %p86 = scmp.ne.s32.totalorder %s74, %s75
      %p87 = scmp.eq.s32.totalorder %s30, 1
      %p88 = por %p86, %p87
      %p90 = scmp.ne.s32.totalorder %s75, %s89
      %p91 = scmp.eq.s32.totalorder %s30, 0
      %p92 = por %p90, %p91
      %s94 = sadd.s32 %s93, 1
      %p97 = scmp.eq.s32.totalorder %s24, 1
      %p98 = scmp.ne.s32.totalorder %s93, %s95
      %p99 = scmp.eq.s32.totalorder %s24, 0
      %p100 = por %p98, %p99
      %p101 = scmp.ne.s32.totalorder %s93, %s95
      %p102 = scmp.eq.s32.totalorder %s29, 1
      %p103 = por %p101, %p102
      %p104 = scmp.ne.s32.totalorder %s95, %s96
      %p105 = scmp.eq.s32.totalorder %s29, 0
      %p106 = por %p104, %p105
      %p107 = scmp.ne.s32.totalorder %s95, %s96
      %p108 = scmp.eq.s32.totalorder %s30, 1
      %p109 = por %p107, %p108
      %p111 = scmp.ne.s32.totalorder %s96, %s110
      %p112 = scmp.eq.s32.totalorder %s30, 0
      %p113 = por %p111, %p112
      %s115 = sadd.s32 %s114, 1
      %p118 = scmp.eq.s32.totalorder %s24, 1
      %p119 = scmp.ne.s32.totalorder %s114, %s116
      %p120 = scmp.eq.s32.totalorder %s24, 0
      %p121 = por %p119, %p120
      %p122 = scmp.ne.s32.totalorder %s114, %s116
      %p123 = scmp.eq.s32.totalorder %s29, 1
      %p124 = por %p122, %p123
      %p125 = scmp.ne.s32.totalorder %s116, %s117
      %p126 = scmp.eq.s32.totalorder %s29, 0
      %p127 = por %p125, %p126
      %p128 = scmp.ne.s32.totalorder %s116, %s117
      %p129 = scmp.eq.s32.totalorder %s30, 1
      %p130 = por %p128, %p129
      %p132 = scmp.ne.s32.totalorder %s117, %s131
      %p133 = scmp.eq.s32.totalorder %s30, 0
      %p134 = por %p132, %p133
      %s135 = ssub.s32 %s31, %s43
      %s136 = ssub.s32 %s32, %s39
      %s137 = sor.u32 %s135, %s136
      %p138 = scmp.eq.s32.totalorder %s137, 0
      %s140 = sadd.s32 %s139, 1
      %s141 = scalar_select %p138, %s139, %s140
      %p144 = pneg %p138
      %p145 = scmp.eq.s32.totalorder %s24, 1
      %p146 = por %p144, %p145
      %p147 = scmp.ne.s32.totalorder %s139, %s142
      %p148 = scmp.eq.s32.totalorder %s24, 0
      %p149 = por %p147, %p148
      %p150 = scmp.ne.s32.totalorder %s139, %s142
      %p151 = scmp.eq.s32.totalorder %s29, 1
      %p152 = por %p150, %p151
      %p153 = scmp.ne.s32.totalorder %s142, %s143
      %p154 = scmp.eq.s32.totalorder %s29, 0
      %p155 = por %p153, %p154
      %p156 = scmp.ne.s32.totalorder %s142, %s143
      %p157 = scmp.eq.s32.totalorder %s30, 1
      %p158 = por %p156, %p157
      %p160 = scmp.ne.s32.totalorder %s143, %s159
      %p161 = scmp.eq.s32.totalorder %s30, 0
      %p162 = por %p160, %p161
      %s163 = ssub.s32 %s31, %s43
      %s164 = ssub.s32 %s32, %s39
      %s165 = sor.u32 %s163, %s164
      %p166 = scmp.eq.s32.totalorder %s165, 0
      %s168 = sadd.s32 %s167, 1
      %s169 = scalar_select %p166, %s167, %s168
      %p172 = pneg %p166
      %p173 = scmp.eq.s32.totalorder %s24, 1
      %p174 = por %p172, %p173
      %p175 = scmp.ne.s32.totalorder %s167, %s170
      %p176 = scmp.eq.s32.totalorder %s24, 0
      %p177 = por %p175, %p176
      %p178 = scmp.ne.s32.totalorder %s167, %s170
      %p179 = scmp.eq.s32.totalorder %s29, 1
      %p180 = por %p178, %p179
      %p181 = scmp.ne.s32.totalorder %s170, %s171
      %p182 = scmp.eq.s32.totalorder %s29, 0
      %p183 = por %p181, %p182
      %p184 = scmp.ne.s32.totalorder %s170, %s171
      %p185 = scmp.eq.s32.totalorder %s30, 1
      %p186 = por %p184, %p185
      %p188 = scmp.ne.s32.totalorder %s171, %s187
      %p189 = scmp.eq.s32.totalorder %s30, 0
      %p190 = por %p188, %p189
      %s191 = ssub.s32 %s31, %s43
      %s192 = ssub.s32 %s32, %s39
      %s193 = sor.u32 %s191, %s192
      %p194 = scmp.eq.s32.totalorder %s193, 0
      %s196 = sadd.s32 %s195, 1
      %s197 = scalar_select %p194, %s195, %s196
      %p200 = pneg %p194
      %p201 = scmp.eq.s32.totalorder %s24, 1
      %p202 = por %p200, %p201
      %p203 = scmp.ne.s32.totalorder %s195, %s198
      %p204 = scmp.eq.s32.totalorder %s24, 0
      %p205 = por %p203, %p204
      %p206 = scmp.ne.s32.totalorder %s195, %s198
      %p207 = scmp.eq.s32.totalorder %s29, 1
      %p208 = por %p206, %p207
      %p209 = scmp.ne.s32.totalorder %s198, %s199
      %p210 = scmp.eq.s32.totalorder %s29, 0
      %p211 = por %p209, %p210
      %p212 = scmp.ne.s32.totalorder %s198, %s199
      %p213 = scmp.eq.s32.totalorder %s30, 1
      %p214 = por %p212, %p213
      %p216 = scmp.ne.s32.totalorder %s199, %s215
      %p217 = scmp.eq.s32.totalorder %s30, 0
      %p218 = por %p216, %p217
      %p219 = scmp.le.s32.totalorder 1, %s24
      %p220 = scmp.lt.s32.totalorder %s24, 3
      %p221 = pnand %p219, %p220
      %p222 = pneg %p221
      // Predicated region
      $region9: #{tpu_custom_call.1} parent=5 // pred_check
        _
      $region10: #{tpu_custom_call.1} parent=5 // pred_check_branch
        %224 = sbr.rel (%p221) target = $region12
      $region11: #{tpu_custom_call.1} parent=5 // pred_region
        %s225 = ssub.s32 %s24, 1
        // Predicated region
        $region13: #{tpu_custom_call.1} parent=11 // pred_check
          %p226 = pneg %p85
        $region14: #{tpu_custom_call.1} parent=11 // pred_check_branch
          %228 = sbr.rel (%p226) target = $region16
        $region15: #{tpu_custom_call.1} parent=11 // pred_region
          %s230 = ssub.s32 2048, 2048
          %231 = vsyncadd [#allocation6], %s230
          %s232 = sshll.u32 [#allocation5], 4
          %s233 = int_to_ptr.vmem [resolvable:$true] %s232
          %238 = dma.hbm_to_vmem [thread:$0]  %s1, 2048, %s233, [#allocation6], 128, 128, 8
        $region16: #{tpu_custom_call.1} parent=11 // pred_fallthru
          _
        // Predicated region
        $region17: #{tpu_custom_call.1} parent=11 // pred_check
          %p239 = pneg %p106
        $region18: #{tpu_custom_call.1} parent=11 // pred_check_branch
          %241 = sbr.rel (%p239) target = $region20
        $region19: #{tpu_custom_call.1} parent=11 // pred_region
          %s243 = ssub.s32 2048, 2048
          %244 = vsyncadd [#allocation6], %s243
          %s245 = sshll.u32 [#allocation7], 4
          %s246 = int_to_ptr.vmem [resolvable:$true] %s245
          %251 = dma.hbm_to_vmem [thread:$0]  %s2, 2048, %s246, [#allocation6], 128, 128, 8
        $region20: #{tpu_custom_call.1} parent=11 // pred_fallthru
          _
        // Predicated region
        $region21: #{tpu_custom_call.1} parent=11 // pred_check
          %p252 = pneg %p127
        $region22: #{tpu_custom_call.1} parent=11 // pred_check_branch
          %254 = sbr.rel (%p252) target = $region24
        $region23: #{tpu_custom_call.1} parent=11 // pred_region
          %s256 = ssub.s32 2048, 2048
          %257 = vsyncadd [#allocation9], %s256
          %s258 = sshll.u32 [#allocation8], 4
          %s259 = int_to_ptr.vmem [resolvable:$true] %s258
          %264 = dma.hbm_to_vmem [thread:$0]  %s3, 2048, %s259, [#allocation9], 128, 128, 8
        $region24: #{tpu_custom_call.1} parent=11 // pred_fallthru
          _
      $region12: #{tpu_custom_call.1} parent=5 // pred_fallthru
        _
      %p265 = scmp.lt.s32.totalorder %s24, 2
      // Predicated region
      $region25: #{tpu_custom_call.1} parent=5 // pred_check
        %p266 = pneg %p265
      $region26: #{tpu_custom_call.1} parent=5 // pred_check_branch
        %268 = sbr.rel (%p266) target = $region28
      $region27: #{tpu_custom_call.1} parent=5 // pred_region
        // Predicated region
        $region29: #{tpu_custom_call.1} parent=27 // pred_check
          %p269 = pneg %p58
        $region30: #{tpu_custom_call.1} parent=27 // pred_check_branch
          %271 = sbr.rel (%p269) target = $region32
        $region31: #{tpu_custom_call.1} parent=27 // pred_region
          %s272 = sand.u32 %s48, 1
          %s273 = scalar_lea.sflag [#allocation3], %s272
          %s274 = sand.u32 %s48, 1
          %s275 = smul.addr %s274, 16
          %s276 = scalar_lea.vmem [#allocation2], %s275
          %s277 = smul.u32 2, %s32
          %s279 = ssub.s32 256, 256
          %280 = vsyncadd %s273, %s279
          %s281 = smul.addr %s31, 2
          %s282 = sadd.s32 %s277, %s281
          %s283 = smul.addr %s282, 128
          %s284 = scalar_lea.hbm %s0, %s283
          %s285 = sshll.u32 %s276, 4
          %s286 = int_to_ptr.vmem [resolvable:$true] %s285
          %291 = dma.hbm_to_vmem [thread:$0]  %s284, 256, %s286, %s273, 128, 128, 8
        $region32: #{tpu_custom_call.1} parent=27 // pred_fallthru
          _
      $region28: #{tpu_custom_call.1} parent=5 // pred_fallthru
        _
      %p292 = scmp.le.s32.totalorder 1, %s24
      %p293 = scmp.lt.s32.totalorder %s24, 3
      %p294 = pnand %p292, %p293
      %p295 = pneg %p294
      // Predicated region
      $region33: #{tpu_custom_call.1} parent=5 // pred_check
        _
      $region34: #{tpu_custom_call.1} parent=5 // pred_check_branch
        %297 = sbr.rel (%p294) target = $region36
      $region35: #{tpu_custom_call.1} parent=5 // pred_region
        %s298 = ssub.s32 %s24, 1
        %s299 = sand.u32 %s51, 1
        %s300 = scalar_lea.sflag [#allocation3], %s299
        %s301 = sand.u32 %s51, 1
        %s302 = smul.addr %s301, 16
        %s303 = scalar_lea.vmem [#allocation2], %s302
        // Predicated region
        $region37: #{tpu_custom_call.1} parent=35 // pred_check
          %p304 = pneg %p64
        $region38: #{tpu_custom_call.1} parent=35 // pred_check_branch
          %306 = sbr.rel (%p304) target = $region40
        $region39: #{tpu_custom_call.1} parent=35 // pred_region
          %307 = dma.done %s300, 256
        $region40: #{tpu_custom_call.1} parent=35 // pred_fallthru
          _
        // Predicated region
        $region41: #{tpu_custom_call.1} parent=35 // pred_check
          %p308 = pneg %p85
        $region42: #{tpu_custom_call.1} parent=35 // pred_check_branch
          %310 = sbr.rel (%p308) target = $region44
        $region43: #{tpu_custom_call.1} parent=35 // pred_region
          %311 = dma.done [#allocation6], 2048
        $region44: #{tpu_custom_call.1} parent=35 // pred_fallthru
          _
        // Predicated region
        $region45: #{tpu_custom_call.1} parent=35 // pred_check
          %p312 = pneg %p106
        $region46: #{tpu_custom_call.1} parent=35 // pred_check_branch
          %314 = sbr.rel (%p312) target = $region48
        $region47: #{tpu_custom_call.1} parent=35 // pred_region
          %315 = dma.done [#allocation6], 2048
        $region48: #{tpu_custom_call.1} parent=35 // pred_fallthru
          _
        // Predicated region
        $region49: #{tpu_custom_call.1} parent=35 // pred_check
          %p316 = pneg %p127
        $region50: #{tpu_custom_call.1} parent=35 // pred_check_branch
          %318 = sbr.rel (%p316) target = $region52
        $region51: #{tpu_custom_call.1} parent=35 // pred_region
          %319 = dma.done [#allocation9], 2048
        $region52: #{tpu_custom_call.1} parent=35 // pred_fallthru
          _
        %s320 = sand.u32 %s51, 1
        %s321 = scalar_lea.sflag [#allocation3], %s320
        %s322 = sand.u32 %s51, 1
        %s323 = smul.addr %s322, 16
        %s324 = scalar_lea.vmem [#allocation2], %s323
        %p325 = pneg %p64
        %p326 = pneg %p61
        %p327 = pneg %p85
        %p328 = pneg %p82
        %p329 = pneg %p106
        %p330 = pneg %p103
        %p331 = pneg %p127
        %p332 = pneg %p124
        %p333 = pneg %p155
        %p334 = pneg %p152
        %s335 = sand.u32 %s142, 1
        %s336 = scalar_lea.sflag [#allocation4], %s335
        %s337 = sand.u32 %s142, 1
        %s338 = smul.addr %s337, 8
        %s339 = scalar_lea.vmem [#allocation10], %s338
        %p340 = pneg %p183
        %p341 = pneg %p180
        %s342 = sand.u32 %s29, 1
        %s343 = scalar_lea.sflag [#allocation12], %s342
        %s344 = sand.u32 %s170, 1
        %s345 = smul.addr %s344, 8
        %s346 = scalar_lea.vmem [#allocation11], %s345
        %p347 = pneg %p211
        %p348 = pneg %p208
        %s349 = sand.u32 %s29, 1
        %s350 = scalar_lea.sflag [#allocation12], %s349
        %s351 = sand.u32 %s198, 1
        %s352 = smul.addr %s351, 8
        %s353 = scalar_lea.vmem [#allocation13], %s352
        %s354 = smul.u32 2, %s34
        %s355 = smul.u32 2, %s34
        %s356 = smul.u32 2, %s34
        %s357 = smul.u32 2, %s34
        %v358 = vld [vmem:[%s303] sm:$0xff]
        %v359 = vld [vmem:[%s303 + $0x8] sm:$0xff]
        %v360 = vld [vmem:[#allocation5] sm:$0xff]
        %v361 = vld [vmem:[#allocation5 + $0x8] sm:$0xff]
        %v362 = vld [vmem:[#allocation5 + $0x10] sm:$0xff]
        %v363 = vld [vmem:[#allocation5 + $0x18] sm:$0xff]
        %v364 = vld [vmem:[#allocation5 + $0x20] sm:$0xff]
        %v365 = vld [vmem:[#allocation5 + $0x28] sm:$0xff]
        %v366 = vld [vmem:[#allocation5 + $0x30] sm:$0xff]
        %v367 = vld [vmem:[#allocation5 + $0x38] sm:$0xff]
        %v368 = vld [vmem:[#allocation5 + $0x40] sm:$0xff]
        %v369 = vld [vmem:[#allocation5 + $0x48] sm:$0xff]
        %v370 = vld [vmem:[#allocation5 + $0x50] sm:$0xff]
        %v371 = vld [vmem:[#allocation5 + $0x58] sm:$0xff]
        %v372 = vld [vmem:[#allocation5 + $0x60] sm:$0xff]
        %v373 = vld [vmem:[#allocation5 + $0x68] sm:$0xff]
        %v374 = vld [vmem:[#allocation5 + $0x70] sm:$0xff]
        %v375 = vld [vmem:[#allocation5 + $0x78] sm:$0xff]
        %376 = vmatprep.subr.mxu0 0.0
        %377 = vmatpush1.msra.mxu0 %v360
        %378 = vmatprep.subr.mxu0 0.0
        %379 = vmatpush1.msra.mxu0 %v361
        %380 = vmatprep.subr.mxu0 0.0
        %381 = vmatpush1.msra.mxu0 %v362
        %382 = vmatprep.subr.mxu0 0.0
        %383 = vmatpush1.msra.mxu0 %v363
        %384 = vmatprep.subr.mxu0 0.0
        %385 = vmatpush1.msra.mxu0 %v364
        %386 = vmatprep.subr.mxu0 0.0
        %387 = vmatpush1.msra.mxu0 %v365
        %388 = vmatprep.subr.mxu0 0.0
        %389 = vmatpush1.msra.mxu0 %v366
        %390 = vmatprep.subr.mxu0 0.0
        %391 = vmatpush1.msra.mxu0 %v367
        %392 = vmatprep.subr.mxu0 0.0
        %393 = vmatpush1.msra.mxu0 %v368
        %394 = vmatprep.subr.mxu0 0.0
        %395 = vmatpush1.msra.mxu0 %v369
        %396 = vmatprep.subr.mxu0 0.0
        %397 = vmatpush1.msra.mxu0 %v370
        %398 = vmatprep.subr.mxu0 0.0
        %399 = vmatpush1.msra.mxu0 %v371
        %400 = vmatprep.subr.mxu0 0.0
        %401 = vmatpush1.msra.mxu0 %v372
        %402 = vmatprep.subr.mxu0 0.0
        %403 = vmatpush1.msra.mxu0 %v373
        %404 = vmatprep.subr.mxu0 0.0
        %405 = vmatpush1.msra.mxu0 %v374
        %406 = vmatprep.subr.mxu0 0.0
        %407 = vmatpush1.msra.mxu0 %v375
        %408 = vmatprep.subr.mxu0 0.0
        %409 = vmatpush1.msra.mxu0 0.0
        %410 = vmatprep.subr.mxu0 0.0
        %411 = vmatpush1.msra.mxu0 0.0
        %412 = vmatprep.subr.mxu0 0.0
        %413 = vmatpush1.msra.mxu0 0.0
        %414 = vmatprep.subr.mxu0 0.0
        %415 = vmatpush1.msra.mxu0 0.0
        %416 = vmatprep.subr.mxu0 0.0
        %417 = vmatpush1.msra.mxu0 0.0
        %418 = vmatprep.subr.mxu0 0.0
        %419 = vmatpush1.msra.mxu0 0.0
        %420 = vmatprep.subr.mxu0 0.0
        %421 = vmatpush1.msra.mxu0 0.0
        %422 = vmatprep.subr.mxu0 0.0
        %423 = vmatpush1.msra.mxu0 0.0
        %424 = vmatprep.subr.mxu0 0.0
        %425 = vmatpush1.msra.mxu0 0.0
        %426 = vmatprep.subr.mxu0 0.0
        %427 = vmatpush1.msra.mxu0 0.0
        %428 = vmatprep.subr.mxu0 0.0
        %429 = vmatpush1.msra.mxu0 0.0
        %430 = vmatprep.subr.mxu0 0.0
        %431 = vmatpush1.msra.mxu0 0.0
        %432 = vmatprep.subr.mxu0 0.0
        %433 = vmatpush1.msra.mxu0 0.0
        %434 = vmatprep.subr.mxu0 0.0
        %435 = vmatpush1.msra.mxu0 0.0
        %436 = vmatprep.subr.mxu0 0.0
        %437 = vmatpush1.msra.mxu0 0.0
        %438 = vmatprep.subr.mxu0 0.0
        %439 = vmatpush1.msra.mxu0 0.0
        %440 = vmatprep.mubr.f32.mxu0 0.0
        %441 = vmatmul.mubr.f32.gmra.mrb[0].mxu0 %v358
        %v442 = vpop.f32.mrb[0].mxu0
        %v443 = vadd.f32 0.0, %v442
        %v444 = vpop.f32.mrb[0].mxu0
        %445 = vmatprep.mubr.f32.mxu0 0.0
        %446 = vmatmul.mubr.f32.gmra.mrb[0].mxu0 %v359
        %v447 = vpop.f32.mrb[0].mxu0
        %v448 = vadd.f32 0.0, %v447
        %v449 = vpop.f32.mrb[0].mxu0
        %450 = vdwg.mxu0
        %v451 = vmul.f32 %v443, 0.70710677
        %v452 = vmul.f32 %v448, 0.70710677
        %v453 = vld [vmem:[#allocation7] sm:$0xff]
        %v454 = vld [vmem:[#allocation7 + $0x8] sm:$0xff]
        %v455 = vld [vmem:[#allocation7 + $0x10] sm:$0xff]
        %v456 = vld [vmem:[#allocation7 + $0x18] sm:$0xff]
        %v457 = vld [vmem:[#allocation7 + $0x20] sm:$0xff]
        %v458 = vld [vmem:[#allocation7 + $0x28] sm:$0xff]
        %v459 = vld [vmem:[#allocation7 + $0x30] sm:$0xff]
        %v460 = vld [vmem:[#allocation7 + $0x38] sm:$0xff]
        %v461 = vld [vmem:[#allocation7 + $0x40] sm:$0xff]
        %v462 = vld [vmem:[#allocation7 + $0x48] sm:$0xff]
        %v463 = vld [vmem:[#allocation7 + $0x50] sm:$0xff]
        %v464 = vld [vmem:[#allocation7 + $0x58] sm:$0xff]
        %v465 = vld [vmem:[#allocation7 + $0x60] sm:$0xff]
        %v466 = vld [vmem:[#allocation7 + $0x68] sm:$0xff]
        %v467 = vld [vmem:[#allocation7 + $0x70] sm:$0xff]
        %v468 = vld [vmem:[#allocation7 + $0x78] sm:$0xff]
        %469 = vmatprep.subr.mxu0 0.0
        %470 = vmatpush1.msra.mxu0 %v453
        %471 = vmatprep.subr.mxu0 0.0
        %472 = vmatpush1.msra.mxu0 %v454
        %473 = vmatprep.subr.mxu0 0.0
        %474 = vmatpush1.msra.mxu0 %v455
        %475 = vmatprep.subr.mxu0 0.0
        %476 = vmatpush1.msra.mxu0 %v456
        %477 = vmatprep.subr.mxu0 0.0
        %478 = vmatpush1.msra.mxu0 %v457
        %479 = vmatprep.subr.mxu0 0.0
        %480 = vmatpush1.msra.mxu0 %v458
        %481 = vmatprep.subr.mxu0 0.0
        %482 = vmatpush1.msra.mxu0 %v459
        %483 = vmatprep.subr.mxu0 0.0
        %484 = vmatpush1.msra.mxu0 %v460
        %485 = vmatprep.subr.mxu0 0.0
        %486 = vmatpush1.msra.mxu0 %v461
        %487 = vmatprep.subr.mxu0 0.0
        %488 = vmatpush1.msra.mxu0 %v462
        %489 = vmatprep.subr.mxu0 0.0
        %490 = vmatpush1.msra.mxu0 %v463
        %491 = vmatprep.subr.mxu0 0.0
        %492 = vmatpush1.msra.mxu0 %v464
        %493 = vmatprep.subr.mxu0 0.0
        %494 = vmatpush1.msra.mxu0 %v465
        %495 = vmatprep.subr.mxu0 0.0
        %496 = vmatpush1.msra.mxu0 %v466
        %497 = vmatprep.subr.mxu0 0.0
        %498 = vmatpush1.msra.mxu0 %v467
        %499 = vmatprep.subr.mxu0 0.0
        %500 = vmatpush1.msra.mxu0 %v468
        %501 = vmatprep.subr.mxu0 0.0
        %502 = vmatpush1.msra.mxu0 0.0
        %503 = vmatprep.subr.mxu0 0.0
        %504 = vmatpush1.msra.mxu0 0.0
        %505 = vmatprep.subr.mxu0 0.0
        %506 = vmatpush1.msra.mxu0 0.0
        %507 = vmatprep.subr.mxu0 0.0
        %508 = vmatpush1.msra.mxu0 0.0
        %509 = vmatprep.subr.mxu0 0.0
        %510 = vmatpush1.msra.mxu0 0.0
        %511 = vmatprep.subr.mxu0 0.0
        %512 = vmatpush1.msra.mxu0 0.0
        %513 = vmatprep.subr.mxu0 0.0
        %514 = vmatpush1.msra.mxu0 0.0
        %515 = vmatprep.subr.mxu0 0.0
        %516 = vmatpush1.msra.mxu0 0.0
        %517 = vmatprep.subr.mxu0 0.0
        %518 = vmatpush1.msra.mxu0 0.0
        %519 = vmatprep.subr.mxu0 0.0
        %520 = vmatpush1.msra.mxu0 0.0
        %521 = vmatprep.subr.mxu0 0.0
        %522 = vmatpush1.msra.mxu0 0.0
        %523 = vmatprep.subr.mxu0 0.0
        %524 = vmatpush1.msra.mxu0 0.0
        %525 = vmatprep.subr.mxu0 0.0
        %526 = vmatpush1.msra.mxu0 0.0
        %527 = vmatprep.subr.mxu0 0.0
        %528 = vmatpush1.msra.mxu0 0.0
        %529 = vmatprep.subr.mxu0 0.0
        %530 = vmatpush1.msra.mxu0 0.0
        %531 = vmatprep.subr.mxu0 0.0
        %532 = vmatpush1.msra.mxu0 0.0
        %533 = vmatprep.mubr.f32.mxu0 0.0
        %534 = vmatmul.mubr.f32.gmra.mrb[0].mxu0 %v358
        %v535 = vpop.f32.mrb[0].mxu0
        %v536 = vadd.f32 0.0, %v535
        %v537 = vpop.f32.mrb[0].mxu0
        %538 = vmatprep.mubr.f32.mxu0 0.0
        %539 = vmatmul.mubr.f32.gmra.mrb[0].mxu0 %v359
        %v540 = vpop.f32.mrb[0].mxu0
        %v541 = vadd.f32 0.0, %v540
        %v542 = vpop.f32.mrb[0].mxu0
        %543 = vdwg.mxu0
        %v544 = vld [vmem:[#allocation8] sm:$0xff]
        %v545 = vld [vmem:[#allocation8 + $0x8] sm:$0xff]
        %v546 = vld [vmem:[#allocation8 + $0x10] sm:$0xff]
        %v547 = vld [vmem:[#allocation8 + $0x18] sm:$0xff]
        %v548 = vld [vmem:[#allocation8 + $0x20] sm:$0xff]
        %v549 = vld [vmem:[#allocation8 + $0x28] sm:$0xff]
        %v550 = vld [vmem:[#allocation8 + $0x30] sm:$0xff]
        %v551 = vld [vmem:[#allocation8 + $0x38] sm:$0xff]
        %v552 = vld [vmem:[#allocation8 + $0x40] sm:$0xff]
        %v553 = vld [vmem:[#allocation8 + $0x48] sm:$0xff]
        %v554 = vld [vmem:[#allocation8 + $0x50] sm:$0xff]
        %v555 = vld [vmem:[#allocation8 + $0x58] sm:$0xff]
        %v556 = vld [vmem:[#allocation8 + $0x60] sm:$0xff]
        %v557 = vld [vmem:[#allocation8 + $0x68] sm:$0xff]
        %v558 = vld [vmem:[#allocation8 + $0x70] sm:$0xff]
        %v559 = vld [vmem:[#allocation8 + $0x78] sm:$0xff]
        %560 = vmatprep.subr.mxu0 0.0
        %561 = vmatpush1.msra.mxu0 %v544
        %562 = vmatprep.subr.mxu0 0.0
        %563 = vmatpush1.msra.mxu0 %v545
        %564 = vmatprep.subr.mxu0 0.0
        %565 = vmatpush1.msra.mxu0 %v546
        %566 = vmatprep.subr.mxu0 0.0
        %567 = vmatpush1.msra.mxu0 %v547
        %568 = vmatprep.subr.mxu0 0.0
        %569 = vmatpush1.msra.mxu0 %v548
        %570 = vmatprep.subr.mxu0 0.0
        %571 = vmatpush1.msra.mxu0 %v549
        %572 = vmatprep.subr.mxu0 0.0
        %573 = vmatpush1.msra.mxu0 %v550
        %574 = vmatprep.subr.mxu0 0.0
        %575 = vmatpush1.msra.mxu0 %v551
        %576 = vmatprep.subr.mxu0 0.0
        %577 = vmatpush1.msra.mxu0 %v552
        %578 = vmatprep.subr.mxu0 0.0
        %579 = vmatpush1.msra.mxu0 %v553
        %580 = vmatprep.subr.mxu0 0.0
        %581 = vmatpush1.msra.mxu0 %v554
        %582 = vmatprep.subr.mxu0 0.0
        %583 = vmatpush1.msra.mxu0 %v555
        %584 = vmatprep.subr.mxu0 0.0
        %585 = vmatpush1.msra.mxu0 %v556
        %586 = vmatprep.subr.mxu0 0.0
        %587 = vmatpush1.msra.mxu0 %v557
        %588 = vmatprep.subr.mxu0 0.0
        %589 = vmatpush1.msra.mxu0 %v558
        %590 = vmatprep.subr.mxu0 0.0
        %591 = vmatpush1.msra.mxu0 %v559
        %592 = vmatprep.subr.mxu0 0.0
        %593 = vmatpush1.msra.mxu0 0.0
        %594 = vmatprep.subr.mxu0 0.0
        %595 = vmatpush1.msra.mxu0 0.0
        %596 = vmatprep.subr.mxu0 0.0
        %597 = vmatpush1.msra.mxu0 0.0
        %598 = vmatprep.subr.mxu0 0.0
        %599 = vmatpush1.msra.mxu0 0.0
        %600 = vmatprep.subr.mxu0 0.0
        %601 = vmatpush1.msra.mxu0 0.0
        %602 = vmatprep.subr.mxu0 0.0
        %603 = vmatpush1.msra.mxu0 0.0
        %604 = vmatprep.subr.mxu0 0.0
        %605 = vmatpush1.msra.mxu0 0.0
        %606 = vmatprep.subr.mxu0 0.0
        %607 = vmatpush1.msra.mxu0 0.0
        %608 = vmatprep.subr.mxu0 0.0
        %609 = vmatpush1.msra.mxu0 0.0
        %610 = vmatprep.subr.mxu0 0.0
        %611 = vmatpush1.msra.mxu0 0.0
        %612 = vmatprep.subr.mxu0 0.0
        %613 = vmatpush1.msra.mxu0 0.0
        %614 = vmatprep.subr.mxu0 0.0
        %615 = vmatpush1.msra.mxu0 0.0
        %616 = vmatprep.subr.mxu0 0.0
        %617 = vmatpush1.msra.mxu0 0.0
        %618 = vmatprep.subr.mxu0 0.0
        %619 = vmatpush1.msra.mxu0 0.0
        %620 = vmatprep.subr.mxu0 0.0
        %621 = vmatpush1.msra.mxu0 0.0
        %622 = vmatprep.subr.mxu0 0.0
        %623 = vmatpush1.msra.mxu0 0.0
        %624 = vmatprep.mubr.f32.mxu0 0.0
        %625 = vmatmul.mubr.f32.gmra.mrb[0].mxu0 %v358
        %v626 = vpop.f32.mrb[0].mxu0
        %v627 = vadd.f32 0.0, %v626
        %v628 = vpop.f32.mrb[0].mxu0
        %629 = vmatprep.mubr.f32.mxu0 0.0
        %630 = vmatmul.mubr.f32.gmra.mrb[0].mxu0 %v359
        %v631 = vpop.f32.mrb[0].mxu0
        %v632 = vadd.f32 0.0, %v631
        %v633 = vpop.f32.mrb[0].mxu0
        %634 = vdwg.mxu0
        %v635 = vpack.c.bf16 %v452, %v451
        %v637 = vunpack.c.l.b16 %v635
        %v638 = vunpack.c.h.b16 %v635
        %v639 = vpack.c.b16 %v637, %v637
        %v640 = vpack.c.b16 %v638, %v638
        %643 = vst [vmem:[%s339] sm:$0xf] %v639
        %644 = vst [vmem:[%s339 + $0x4] sm:$0xf] %v640
        %v645 = vpack.c.bf16 %v541, %v536
        %v647 = vunpack.c.l.b16 %v645
        %v648 = vunpack.c.h.b16 %v645
        %v649 = vpack.c.b16 %v647, %v647
        %v650 = vpack.c.b16 %v648, %v648
        %653 = vst [vmem:[%s346] sm:$0xf] %v649
        %654 = vst [vmem:[%s346 + $0x4] sm:$0xf] %v650
        %v655 = vpack.c.bf16 %v632, %v627
        %v657 = vunpack.c.l.b16 %v655
        %v658 = vunpack.c.h.b16 %v655
        %v659 = vpack.c.b16 %v657, %v657
        %v660 = vpack.c.b16 %v658, %v658
        %663 = vst [vmem:[%s353] sm:$0xf] %v659
        %664 = vst [vmem:[%s353 + $0x4] sm:$0xf] %v660
        %s665 = sand.u32 %s142, 1
        %s666 = scalar_lea.sflag [#allocation4], %s665
        %s667 = sand.u32 %s142, 1
        %s668 = smul.addr %s667, 8
        %s669 = scalar_lea.vmem [#allocation10], %s668
        %s670 = sand.u32 %s29, 1
        %s671 = scalar_lea.sflag [#allocation12], %s670
        %s672 = sand.u32 %s170, 1
        %s673 = smul.addr %s672, 8
        %s674 = scalar_lea.vmem [#allocation11], %s673
        %s675 = sand.u32 %s29, 1
        %s676 = scalar_lea.sflag [#allocation12], %s675
        %s677 = sand.u32 %s198, 1
        %s678 = smul.addr %s677, 8
        %s679 = scalar_lea.vmem [#allocation13], %s678
        // Predicated region
        $region53: #{tpu_custom_call.1} parent=35 // pred_check
          %p680 = pneg %p152
        $region54: #{tpu_custom_call.1} parent=35 // pred_check_branch
          %682 = sbr.rel (%p680) target = $region56
        $region55: #{tpu_custom_call.1} parent=35 // pred_region
          %s683 = smul.u32 2, %s34
          %s685 = ssub.s32 128, 128
          %686 = vsyncadd %s666, %s685
          %s687 = smul.addr %s33, 2
          %s688 = sadd.s32 %s683, %s687
          %s689 = smul.addr %s688, 64
          %s690 = scalar_lea.hbm %s4, %s689
          %s691 = sshll.u32 %s669, 4
          %s692 = int_to_ptr.vmem [resolvable:$true] %s691
          %697 = dma.vmem_to_hbm [thread:$0]  %s692, 128, %s690, %s666, 64, 64, 4
        $region56: #{tpu_custom_call.1} parent=35 // pred_fallthru
          _
        // Predicated region
        $region57: #{tpu_custom_call.1} parent=35 // pred_check
          %p698 = pneg %p180
        $region58: #{tpu_custom_call.1} parent=35 // pred_check_branch
          %700 = sbr.rel (%p698) target = $region60
        $region59: #{tpu_custom_call.1} parent=35 // pred_region
          %s701 = smul.u32 2, %s34
          %s703 = ssub.s32 128, 128
          %704 = vsyncadd %s671, %s703
          %s705 = smul.addr %s33, 2
          %s706 = sadd.s32 %s701, %s705
          %s707 = smul.addr %s706, 64
          %s708 = scalar_lea.hbm %s5, %s707
          %s709 = sshll.u32 %s674, 4
          %s710 = int_to_ptr.vmem [resolvable:$true] %s709
          %715 = dma.vmem_to_hbm [thread:$0]  %s710, 128, %s708, %s671, 64, 64, 4
        $region60: #{tpu_custom_call.1} parent=35 // pred_fallthru
          _
        // Predicated region
        $region61: #{tpu_custom_call.1} parent=35 // pred_check
          %p716 = pneg %p208
        $region62: #{tpu_custom_call.1} parent=35 // pred_check_branch
          %718 = sbr.rel (%p716) target = $region64
        $region63: #{tpu_custom_call.1} parent=35 // pred_region
          %s719 = smul.u32 2, %s34
          %s721 = ssub.s32 128, 128
          %722 = vsyncadd %s676, %s721
          %s723 = smul.addr %s33, 2
          %s724 = sadd.s32 %s719, %s723
          %s725 = smul.addr %s724, 64
          %s726 = scalar_lea.hbm %s6, %s725
          %s727 = sshll.u32 %s679, 4
          %s728 = int_to_ptr.vmem [resolvable:$true] %s727
          %733 = dma.vmem_to_hbm [thread:$0]  %s728, 128, %s726, %s676, 64, 64, 4
        $region64: #{tpu_custom_call.1} parent=35 // pred_fallthru
          _
      $region36: #{tpu_custom_call.1} parent=5 // pred_fallthru
        _
      %p734 = scmp.le.s32.totalorder 2, %s24
      // Predicated region
      $region65: #{tpu_custom_call.1} parent=5 // pred_check
        %p735 = pneg %p734
      $region66: #{tpu_custom_call.1} parent=5 // pred_check_branch
        %737 = sbr.rel (%p735) target = $region68
      $region67: #{tpu_custom_call.1} parent=5 // pred_region
        %s738 = ssub.s32 %s24, 2
        // Predicated region
        $region69: #{tpu_custom_call.1} parent=67 // pred_check
          %p739 = pneg %p158
        $region70: #{tpu_custom_call.1} parent=67 // pred_check_branch
          %741 = sbr.rel (%p739) target = $region72
        $region71: #{tpu_custom_call.1} parent=67 // pred_region
          %s742 = sand.u32 %s143, 1
          %s743 = scalar_lea.sflag [#allocation4], %s742
          %s744 = sand.u32 %s143, 1
          %s745 = smul.addr %s744, 8
          %s746 = scalar_lea.vmem [#allocation10], %s745
          %747 = dma.done %s743, 128
        $region72: #{tpu_custom_call.1} parent=67 // pred_fallthru
          _
        // Predicated region
        $region73: #{tpu_custom_call.1} parent=67 // pred_check
          %p748 = pneg %p186
        $region74: #{tpu_custom_call.1} parent=67 // pred_check_branch
          %750 = sbr.rel (%p748) target = $region76
        $region75: #{tpu_custom_call.1} parent=67 // pred_region
          %s751 = sand.u32 %s30, 1
          %s752 = scalar_lea.sflag [#allocation12], %s751
          %s753 = sand.u32 %s171, 1
          %s754 = smul.addr %s753, 8
          %s755 = scalar_lea.vmem [#allocation11], %s754
          %756 = dma.done %s752, 128
        $region76: #{tpu_custom_call.1} parent=67 // pred_fallthru
          _
        // Predicated region
        $region77: #{tpu_custom_call.1} parent=67 // pred_check
          %p757 = pneg %p214
        $region78: #{tpu_custom_call.1} parent=67 // pred_check_branch
          %759 = sbr.rel (%p757) target = $region80
        $region79: #{tpu_custom_call.1} parent=67 // pred_region
          %s760 = sand.u32 %s30, 1
          %s761 = scalar_lea.sflag [#allocation12], %s760
          %s762 = sand.u32 %s199, 1
          %s763 = smul.addr %s762, 8
          %s764 = scalar_lea.vmem [#allocation13], %s763
          %765 = dma.done %s761, 128
        $region80: #{tpu_custom_call.1} parent=67 // pred_fallthru
          _
      $region68: #{tpu_custom_call.1} parent=5 // pred_fallthru
        _
    $region6: #{tpu_custom_call.1} parent=1 // loop_footer
      %s28 = sadd.s32 1, %s24
    $region7: #{tpu_custom_call.1} parent=1 // loop_footer_branch
      %23 = sbr.rel target = $region3
    $region8: #{tpu_custom_call.1} parent=1 // loop_exit
      _
    %766 = vsyncpa [#allocation3], 1
    %s767 = scalar_lea.sflag [#allocation3], 1
    %768 = vsyncpa %s767, 1
    %769 = vsyncpa [#allocation6], 1
    %770 = vsyncpa [#allocation9], 1
    %771 = vsyncpa [#allocation4], 1
    %s772 = scalar_lea.sflag [#allocation4], 1
    %773 = vsyncpa %s772, 1
    %774 = vsyncpa [#allocation12], 1
    %s775 = scalar_lea.sflag [#allocation12], 1
    %776 = vsyncpa %s775, 1

</llo_original>
